<compile_context>
chip_gen: v5e
topology: v5e:2x2
jax: 0.10.0
libtpu: 0.0.40
codegen_flags: <defaults>
</compile_context>

<pallas_src>
import math

import jax
import jax.numpy as jnp
from jax import lax
from jax.experimental import pallas as pl
from jax.experimental.pallas import tpu as pltpu


def _flash_self_attention_kernel(xq_ref, xkv_ref, wq_ref, wkv_ref,
                                 bq_ref, bkv_ref, o_ref,
                                 q_sc, m_sc, l_sc, acc_sc):
    # xq_ref:  (1, tq, F) bf16      xkv_ref: (1, tk, F) bf16
    # wq_ref:  (F, F)     bf16      wkv_ref: (F, 2F)    bf16 (Wk^T | Wv^T)
    # bq_ref:  (1, F)     f32       bkv_ref: (1, 2F)    f32  (bk | bv)
    # o_ref:   (1, tq, F) out dtype
    # scratch: q_sc (tq, F) bf16, m_sc/l_sc (tq, 1) f32, acc_sc (tq, F) f32
    ki = pl.program_id(2)
    feature_dim = xq_ref.shape[-1]
    scale = 1.0 / math.sqrt(float(feature_dim))

    @pl.when(ki == 0)
    def _init():
        # Online-softmax state.
        m_sc[...] = jnp.full(m_sc.shape, -jnp.inf, dtype=m_sc.dtype)
        l_sc[...] = jnp.zeros(l_sc.shape, dtype=l_sc.dtype)
        acc_sc[...] = jnp.zeros(acc_sc.shape, dtype=acc_sc.dtype)
        # Q projection depends only on (b, qi): compute it once per query tile,
        # fold in 1/sqrt(F), cache as bf16 for the MXU.
        q = jnp.dot(xq_ref[0], wq_ref[...],
                    preferred_element_type=jnp.float32) + bq_ref[...]
        q_sc[...] = (q * scale).astype(jnp.bfloat16)

    # Fused K/V projection: one (tk, F) @ (F, 2F) matmul per KV tile.
    kv = jnp.dot(xkv_ref[0], wkv_ref[...],
                 preferred_element_type=jnp.float32) + bkv_ref[...]
    k = kv[:, :feature_dim].astype(jnp.bfloat16)     # (tk, F)
    v = kv[:, feature_dim:].astype(jnp.bfloat16)     # (tk, F)

    q = q_sc[...]                                    # (tq, F) bf16, cached

    # scores = q @ k^T as a contraction over the last dim of both operands
    # (no materialized transpose of k).
    s = lax.dot_general(q, k, (((1,), (1,)), ((), ())),
                        preferred_element_type=jnp.float32)   # (tq, tk) f32

    # Online (streaming) softmax update across KV tiles.
    m_prev = m_sc[...]                                        # (tq, 1)
    m_new = jnp.maximum(m_prev, jnp.max(s, axis=-1, keepdims=True))
    alpha = jnp.exp(m_prev - m_new)                           # (tq, 1)
    # f32 exp kept for v5e compatibility (no bf16 EUP there); `s` is dead after
    # this line so only one (tq, tk) f32 temporary stays live.
    p = jnp.exp(s - m_new)                                    # (tq, tk) f32
    l_sc[...] = alpha * l_sc[...] + jnp.sum(p, axis=-1, keepdims=True)
    acc_sc[...] = alpha * acc_sc[...] + jnp.dot(
        p.astype(jnp.bfloat16), v, preferred_element_type=jnp.float32)
    m_sc[...] = m_new

    @pl.when(ki == pl.num_programs(2) - 1)
    def _finalize():
        inv_l = pl.reciprocal(l_sc[...], approx=True)         # EUP, ~free
        o_ref[0] = (acc_sc[...] * inv_l).astype(o_ref.dtype)


def _pick_tile(length, preferred):
    """Largest power-of-two tile <= preferred dividing `length`, else full L."""
    if length <= preferred:
        return length
    t = preferred
    while t >= 8:
        if length % t == 0:
            return t
        t //= 2
    return length


def self_attention(x, wq, wk, wv, bq, bk, bv, *, tq=None, tk=None):
    """x: (B, C, S, F) -> (B, C, S, F), matching the PyTorch SelfAttention."""
    B, C, S, F = x.shape
    L = C * S
    out_dtype = x.dtype

    # Flatten (B, C, S, F) -> (B, L, F) like x.view(...) in the reference; cast
    # matmul operands to bf16 once here (halves HBM traffic, MXU-native).
    x_flat = x.reshape(B, L, F).astype(jnp.bfloat16)
    wq_t = wq.T.astype(jnp.bfloat16)                              # x @ Wq^T
    # Fused K/V weight (Wk^T | Wv^T) and bias (bk | bv).
    wkv_t = jnp.concatenate([wk.T, wv.T], axis=1).astype(jnp.bfloat16)  # (F, 2F)
    bq2 = bq.reshape(1, F).astype(jnp.float32)
    bkv2 = jnp.concatenate([bk, bv], axis=0).reshape(1, 2 * F).astype(jnp.float32)

    if tq is None:
        tq = _pick_tile(L, preferred=512)
        # v7x has 2 TensorCores sharing the parallel grid axes: make sure the
        # parallel extent B*nq gives both cores work when possible.
        while B * (L // tq) < 2 and tq % 16 == 0 and L % (tq // 2) == 0:
            tq //= 2
    if tk is None:
        tk = _pick_tile(L, preferred=512)
    assert L % tq == 0 and L % tk == 0, "tile sizes must divide L = C*S"
    assert tq == L or tq % 8 == 0, "query tile must be 8-aligned or full L"
    assert tk == L or tk % 8 == 0, "kv tile must be 8-aligned or full L"
    nq, nk = L // tq, L // tk

    # Weights / biases are grid-invariant (constant index_map): DMA'd once.
    out_flat = pl.pallas_call(
        _flash_self_attention_kernel,
        out_shape=jax.ShapeDtypeStruct((B, L, F), out_dtype),
        grid_spec=pltpu.PrefetchScalarGridSpec(
            num_scalar_prefetch=0,
            grid=(B, nq, nk),                 # KV (reduction) axis last
            in_specs=[
                pl.BlockSpec((1, tq, F), lambda b, qi, ki: (b, qi, 0)),  # x (Q)
                pl.BlockSpec((1, tk, F), lambda b, qi, ki: (b, ki, 0)),  # x (KV)
                pl.BlockSpec((F, F), lambda b, qi, ki: (0, 0)),          # Wq^T
                pl.BlockSpec((F, 2 * F), lambda b, qi, ki: (0, 0)),      # Wk^T|Wv^T
                pl.BlockSpec((1, F), lambda b, qi, ki: (0, 0)),          # bq
                pl.BlockSpec((1, 2 * F), lambda b, qi, ki: (0, 0)),      # bk|bv
            ],
            out_specs=pl.BlockSpec((1, tq, F), lambda b, qi, ki: (b, qi, 0)),
            scratch_shapes=[
                pltpu.VMEM((tq, F), jnp.bfloat16),  # cached scaled Q tile
                pltpu.VMEM((tq, 1), jnp.float32),   # running max m
                pltpu.VMEM((tq, 1), jnp.float32),   # running denom l
                pltpu.VMEM((tq, F), jnp.float32),   # output accumulator
            ],
        ),
        compiler_params=pltpu.CompilerParams(
            dimension_semantics=("parallel", "parallel", "arbitrary"),
            # 48 MiB scoped VMEM: plenty for these tiles, and still within
            # v7x's 64 MiB physical VMEM (v5e/v6e have 128 MiB).
            vmem_limit_bytes=48 * 1024 * 1024,
        ),
    )(x_flat, x_flat, wq_t, wkv_t, bq2, bkv2)

    return out_flat.reshape(B, C, S, F)


if __name__ == "__main__":
    # Small shapes consistent with the module's forward: (B, C, S, F).
    # L = C*S = 64; tq=tk=32 forces a 2x2 (query-tile x kv-tile) grid per batch
    # element so the online-softmax / Q-cache / accumulator paths are exercised.
    B, C, S, F = 2, 4, 16, 32
    key = jax.random.PRNGKey(0)
    kx, kq, kk, kv, kbq, kbk, kbv = jax.random.split(key, 7)

    x = jax.random.normal(kx, (B, C, S, F), dtype=jnp.float32)

    # Deterministic parameter init (same shapes as nn.Linear(F, F)):
    # weight (F, F), bias (F,).
    bound = 1.0 / math.sqrt(F)
    wq = jax.random.uniform(kq, (F, F), minval=-bound, maxval=bound, dtype=jnp.float32)
    wk = jax.random.uniform(kk, (F, F), minval=-bound, maxval=bound, dtype=jnp.float32)
    wv = jax.random.uniform(kv, (F, F), minval=-bound, maxval=bound, dtype=jnp.float32)
    bq = jax.random.uniform(kbq, (F,), minval=-bound, maxval=bound, dtype=jnp.float32)
    bk = jax.random.uniform(kbk, (F,), minval=-bound, maxval=bound, dtype=jnp.float32)
    bv = jax.random.uniform(kbv, (F,), minval=-bound, maxval=bound, dtype=jnp.float32)

    out = self_attention(x, wq, wk, wv, bq, bk, bv, tq=32, tk=32)
    jax.block_until_ready(out)

    # Pure-JAX f32 reference of the same semantics (kernel uses bf16 MXU
    # operands with f32 accumulation -> tolerance relaxed accordingly).
    xf = x.reshape(B, C * S, F)
    q = xf @ wq.T + bq
    k = xf @ wk.T + bk
    v = xf @ wv.T + bv
    s = (q @ jnp.swapaxes(k, -2, -1)) / (F ** 0.5)
    p = jax.nn.softmax(s, axis=-1)
    ref = (p @ v).reshape(B, C, S, F)
    assert jnp.allclose(out, ref, atol=2e-2, rtol=2e-2), "mismatch vs reference"

    print("KERNEL_OK")
</pallas_src>

<mosaic_0001>
module attributes {stable_mosaic.version = 11 : i64} {
  func.func @_flash_self_attention_kernel(%arg0: i32, %arg1: i32, %arg2: i32, %arg3: memref<1x32x32xbf16, #tpu.memory_space<vmem>>, %arg4: memref<1x32x32xbf16, #tpu.memory_space<vmem>>, %arg5: memref<32x32xbf16, #tpu.memory_space<vmem>>, %arg6: memref<32x64xbf16, #tpu.memory_space<vmem>>, %arg7: memref<1x32xf32, #tpu.memory_space<vmem>>, %arg8: memref<1x64xf32, #tpu.memory_space<vmem>>, %arg9: memref<1x32x32xf32, #tpu.memory_space<vmem>>, %arg10: memref<32x32xbf16, #tpu.memory_space<vmem>>, %arg11: memref<32x1xf32, #tpu.memory_space<vmem>>, %arg12: memref<32x1xf32, #tpu.memory_space<vmem>>, %arg13: memref<32x32xf32, #tpu.memory_space<vmem>>) attributes {dimension_semantics = [#tpu.dimension_semantics<parallel>, #tpu.dimension_semantics<parallel>, #tpu.dimension_semantics<arbitrary>], iteration_bounds = array<i64: 2, 2, 2>, scalar_prefetch = 0 : i64, scratch_operands = 4 : i64, tpu.core_type = #tpu.core_type<tc>, window_params = [{transform_indices = @transform_0, window_bounds = array<i64: 1, 32, 32>}, {transform_indices = @transform_1, window_bounds = array<i64: 1, 32, 32>}, {pipeline_mode = #tpu.pipeline_mode<synchronous>, transform_indices = @transform_2, window_bounds = array<i64: 32, 32>}, {pipeline_mode = #tpu.pipeline_mode<synchronous>, transform_indices = @transform_3, window_bounds = array<i64: 32, 64>}, {pipeline_mode = #tpu.pipeline_mode<synchronous>, transform_indices = @transform_4, window_bounds = array<i64: 1, 32>}, {pipeline_mode = #tpu.pipeline_mode<synchronous>, transform_indices = @transform_5, window_bounds = array<i64: 1, 64>}, {transform_indices = @transform_6, window_bounds = array<i64: 1, 32, 32>}]} {
    %c0_i32 = arith.constant 0 : i32
    %0 = arith.cmpi eq, %arg2, %c0_i32 : i32
    %1 = arith.extui %0 : i1 to i32
    %c0_i32_0 = arith.constant 0 : i32
    %2 = arith.cmpi ne, %1, %c0_i32_0 : i32
    scf.if %2 {
      %cst_26 = arith.constant 0xFF800000 : f32
      %42 = vector.broadcast %cst_26 : f32 to vector<32x1xf32>
      %c0_27 = arith.constant 0 : index
      %c0_28 = arith.constant 0 : index
      %43 = vector.load %arg11[%c0_27, %c0_28] : memref<32x1xf32, #tpu.memory_space<vmem>>, vector<32x1xf32>
      tpu.vector_store %arg11[%c0_27, %c0_28], %42 {strides = array<i32>} : memref<32x1xf32, #tpu.memory_space<vmem>>, vector<32x1xf32>,
      %cst_29 = arith.constant 0.000000e+00 : f32
      %44 = vector.broadcast %cst_29 : f32 to vector<32x1xf32>
      %c0_30 = arith.constant 0 : index
      %c0_31 = arith.constant 0 : index
      %45 = vector.load %arg12[%c0_30, %c0_31] : memref<32x1xf32, #tpu.memory_space<vmem>>, vector<32x1xf32>
      tpu.vector_store %arg12[%c0_30, %c0_31], %44 {strides = array<i32>} : memref<32x1xf32, #tpu.memory_space<vmem>>, vector<32x1xf32>,
      %cst_32 = arith.constant 0.000000e+00 : f32
      %46 = vector.broadcast %cst_32 : f32 to vector<32x32xf32>
      %c0_33 = arith.constant 0 : index
      %c0_34 = arith.constant 0 : index
      %47 = vector.load %arg13[%c0_33, %c0_34] : memref<32x32xf32, #tpu.memory_space<vmem>>, vector<32x32xf32>
      tpu.vector_store %arg13[%c0_33, %c0_34], %46 {strides = array<i32>} : memref<32x32xf32, #tpu.memory_space<vmem>>, vector<32x32xf32>,
      %c0_35 = arith.constant 0 : index
      %c0_36 = arith.constant 0 : index
      %c0_37 = arith.constant 0 : index
      %48 = vector.load %arg3[%c0_35, %c0_36, %c0_37] : memref<1x32x32xbf16, #tpu.memory_space<vmem>>, vector<1x32x32xbf16>
      %49 = vector.shape_cast %48 : vector<1x32x32xbf16> to vector<32x32xbf16>
      %c0_38 = arith.constant 0 : index
      %c0_39 = arith.constant 0 : index
      %50 = vector.load %arg5[%c0_38, %c0_39] : memref<32x32xbf16, #tpu.memory_space<vmem>>, vector<32x32xbf16>
      %cst_40 = arith.constant dense<0.000000e+00> : vector<32x32xf32>
      %51 = tpu.matmul %49, %50, %cst_40 {dimension_numbers = #tpu.dot_dimension_numbers<[1], [0], [0], [1], [0, 0, 1, 1], [], []>} : vector<32x32xbf16>, vector<32x32xbf16>, vector<32x32xf32> -> vector<32x32xf32>
      %c0_41 = arith.constant 0 : index
      %c0_42 = arith.constant 0 : index
      %52 = vector.load %arg7[%c0_41, %c0_42] : memref<1x32xf32, #tpu.memory_space<vmem>>, vector<1x32xf32>
      %53 = vector.broadcast %52 : vector<1x32xf32> to vector<32x32xf32>
      %54 = arith.addf %51, %53 : vector<32x32xf32>
      %cst_43 = arith.constant 0.176776692 : f32
      %55 = vector.broadcast %cst_43 : f32 to vector<32x32xf32>
      %56 = arith.mulf %54, %55 : vector<32x32xf32>
      %57 = arith.truncf %56 : vector<32x32xf32> to vector<32x32xbf16>
      %c0_44 = arith.constant 0 : index
      %c0_45 = arith.constant 0 : index
      %58 = vector.load %arg10[%c0_44, %c0_45] : memref<32x32xbf16, #tpu.memory_space<vmem>>, vector<32x32xbf16>
      tpu.vector_store %arg10[%c0_44, %c0_45], %57 {strides = array<i32>} : memref<32x32xbf16, #tpu.memory_space<vmem>>, vector<32x32xbf16>,
    } else {
    }
    %c0 = arith.constant 0 : index
    %c0_1 = arith.constant 0 : index
    %c0_2 = arith.constant 0 : index
    %3 = vector.load %arg4[%c0, %c0_1, %c0_2] : memref<1x32x32xbf16, #tpu.memory_space<vmem>>, vector<1x32x32xbf16>
    %4 = vector.shape_cast %3 : vector<1x32x32xbf16> to vector<32x32xbf16>
    %c0_3 = arith.constant 0 : index
    %c0_4 = arith.constant 0 : index
    %5 = vector.load %arg6[%c0_3, %c0_4] : memref<32x64xbf16, #tpu.memory_space<vmem>>, vector<32x64xbf16>
    %cst = arith.constant dense<0.000000e+00> : vector<32x64xf32>
    %6 = tpu.matmul %4, %5, %cst {dimension_numbers = #tpu.dot_dimension_numbers<[1], [0], [0], [1], [0, 0, 1, 1], [], []>} : vector<32x32xbf16>, vector<32x64xbf16>, vector<32x64xf32> -> vector<32x64xf32>
    %c0_5 = arith.constant 0 : index
    %c0_6 = arith.constant 0 : index
    %7 = vector.load %arg8[%c0_5, %c0_6] : memref<1x64xf32, #tpu.memory_space<vmem>>, vector<1x64xf32>
    %8 = vector.broadcast %7 : vector<1x64xf32> to vector<32x64xf32>
    %9 = arith.addf %6, %8 : vector<32x64xf32>
    %10 = vector.extract_strided_slice %9 {offsets = [0, 0], sizes = [32, 32], strides = [1, 1]} : vector<32x64xf32> to vector<32x32xf32>
    %11 = arith.truncf %10 : vector<32x32xf32> to vector<32x32xbf16>
    %12 = vector.extract_strided_slice %9 {offsets = [0, 32], sizes = [32, 32], strides = [1, 1]} : vector<32x64xf32> to vector<32x32xf32>
    %13 = arith.truncf %12 : vector<32x32xf32> to vector<32x32xbf16>
    %c0_7 = arith.constant 0 : index
    %c0_8 = arith.constant 0 : index
    %14 = vector.load %arg10[%c0_7, %c0_8] : memref<32x32xbf16, #tpu.memory_space<vmem>>, vector<32x32xbf16>
    %cst_9 = arith.constant dense<0.000000e+00> : vector<32x32xf32>
    %15 = tpu.matmul %14, %11, %cst_9 {dimension_numbers = #tpu.dot_dimension_numbers<[1], [1], [0], [0], [0, 0, 1, 0], [], []>} : vector<32x32xbf16>, vector<32x32xbf16>, vector<32x32xf32> -> vector<32x32xf32>
    %c0_10 = arith.constant 0 : index
    %c0_11 = arith.constant 0 : index
    %16 = vector.load %arg11[%c0_10, %c0_11] : memref<32x1xf32, #tpu.memory_space<vmem>>, vector<32x1xf32>
    %cst_12 = arith.constant dense<0xFF800000> : vector<32xf32>
    %17 = vector.multi_reduction <maximumf>, %15, %cst_12 [1] : vector<32x32xf32> to vector<32xf32>
    %18 = vector.shape_cast %17 : vector<32xf32> to vector<32x1xf32>
    %19 = arith.maximumf %16, %18 : vector<32x1xf32>
    %20 = arith.subf %16, %19 : vector<32x1xf32>
    %21 = math.exp %20 : vector<32x1xf32>
    %22 = vector.broadcast %19 : vector<32x1xf32> to vector<32x32xf32>
    %23 = arith.subf %15, %22 : vector<32x32xf32>
    %24 = math.exp %23 : vector<32x32xf32>
    %c0_13 = arith.constant 0 : index
    %c0_14 = arith.constant 0 : index
    %25 = vector.load %arg12[%c0_13, %c0_14] : memref<32x1xf32, #tpu.memory_space<vmem>>, vector<32x1xf32>
    %26 = arith.mulf %21, %25 : vector<32x1xf32>
    %cst_15 = arith.constant dense<0.000000e+00> : vector<32xf32>
    %27 = vector.multi_reduction <add>, %24, %cst_15 [1] : vector<32x32xf32> to vector<32xf32>
    %28 = vector.shape_cast %27 : vector<32xf32> to vector<32x1xf32>
    %29 = arith.addf %26, %28 : vector<32x1xf32>
    %c0_16 = arith.constant 0 : index
    %c0_17 = arith.constant 0 : index
    %30 = vector.load %arg12[%c0_16, %c0_17] : memref<32x1xf32, #tpu.memory_space<vmem>>, vector<32x1xf32>
    tpu.vector_store %arg12[%c0_16, %c0_17], %29 {strides = array<i32>} : memref<32x1xf32, #tpu.memory_space<vmem>>, vector<32x1xf32>,
    %c0_18 = arith.constant 0 : index
    %c0_19 = arith.constant 0 : index
    %31 = vector.load %arg13[%c0_18, %c0_19] : memref<32x32xf32, #tpu.memory_space<vmem>>, vector<32x32xf32>
    %32 = vector.broadcast %21 : vector<32x1xf32> to vector<32x32xf32>
    %33 = arith.mulf %32, %31 : vector<32x32xf32>
    %34 = arith.truncf %24 : vector<32x32xf32> to vector<32x32xbf16>
    %cst_20 = arith.constant dense<0.000000e+00> : vector<32x32xf32>
    %35 = tpu.matmul %34, %13, %cst_20 {dimension_numbers = #tpu.dot_dimension_numbers<[1], [0], [0], [1], [0, 0, 1, 1], [], []>} : vector<32x32xbf16>, vector<32x32xbf16>, vector<32x32xf32> -> vector<32x32xf32>
    %36 = arith.addf %33, %35 : vector<32x32xf32>
    %c0_21 = arith.constant 0 : index
    %c0_22 = arith.constant 0 : index
    %37 = vector.load %arg13[%c0_21, %c0_22] : memref<32x32xf32, #tpu.memory_space<vmem>>, vector<32x32xf32>
    tpu.vector_store %arg13[%c0_21, %c0_22], %36 {strides = array<i32>} : memref<32x32xf32, #tpu.memory_space<vmem>>, vector<32x32xf32>,
    %c0_23 = arith.constant 0 : index
    %c0_24 = arith.constant 0 : index
    %38 = vector.load %arg11[%c0_23, %c0_24] : memref<32x1xf32, #tpu.memory_space<vmem>>, vector<32x1xf32>
    tpu.vector_store %arg11[%c0_23, %c0_24], %19 {strides = array<i32>} : memref<32x1xf32, #tpu.memory_space<vmem>>, vector<32x1xf32>,
    %c1_i32 = arith.constant 1 : i32
    %39 = arith.cmpi eq, %arg2, %c1_i32 : i32
    %40 = arith.extui %39 : i1 to i32
    %c0_i32_25 = arith.constant 0 : i32
    %41 = arith.cmpi ne, %40, %c0_i32_25 : i32
    scf.if %41 {
      %c0_26 = arith.constant 0 : index
      %c0_27 = arith.constant 0 : index
      %42 = vector.load %arg12[%c0_26, %c0_27] : memref<32x1xf32, #tpu.memory_space<vmem>>, vector<32x1xf32>
      %43 = tpu.reciprocal %42 {approx = true} : vector<32x1xf32> -> vector<32x1xf32>
      %c0_28 = arith.constant 0 : index
      %c0_29 = arith.constant 0 : index
      %44 = vector.load %arg13[%c0_28, %c0_29] : memref<32x32xf32, #tpu.memory_space<vmem>>, vector<32x32xf32>
      %45 = vector.broadcast %43 : vector<32x1xf32> to vector<32x32xf32>
      %46 = arith.mulf %44, %45 : vector<32x32xf32>
      %c0_30 = arith.constant 0 : index
      %c0_31 = arith.constant 0 : index
      %c0_32 = arith.constant 0 : index
      %47 = vector.load %arg9[%c0_30, %c0_31, %c0_32] : memref<1x32x32xf32, #tpu.memory_space<vmem>>, vector<1x32x32xf32>
      %48 = vector.shape_cast %47 : vector<1x32x32xf32> to vector<32x32xf32>
      %49 = vector.shape_cast %46 : vector<32x32xf32> to vector<1x32x32xf32>
      tpu.vector_store %arg9[%c0_30, %c0_31, %c0_32], %49 {strides = array<i32>} : memref<1x32x32xf32, #tpu.memory_space<vmem>>, vector<1x32x32xf32>,
    } else {
    }
    return
  }
  func.func @transform_0(%arg0: i32, %arg1: i32, %arg2: i32) -> (i32, i32, i32) {
    %c0_i32 = arith.constant 0 : i32
    %c0_i32_0 = arith.constant 0 : i32
    return %arg0, %arg1, %c0_i32 : i32, i32, i32
  }
  func.func @transform_1(%arg0: i32, %arg1: i32, %arg2: i32) -> (i32, i32, i32) {
    %c0_i32 = arith.constant 0 : i32
    %c0_i32_0 = arith.constant 0 : i32
    return %arg0, %arg2, %c0_i32 : i32, i32, i32
  }
  func.func @transform_2(%arg0: i32, %arg1: i32, %arg2: i32) -> (i32, i32) {
    %c0_i32 = arith.constant 0 : i32
    %c0_i32_0 = arith.constant 0 : i32
    %c0_i32_1 = arith.constant 0 : i32
    return %c0_i32, %c0_i32_0 : i32, i32
  }
  func.func @transform_3(%arg0: i32, %arg1: i32, %arg2: i32) -> (i32, i32) {
    %c0_i32 = arith.constant 0 : i32
    %c0_i32_0 = arith.constant 0 : i32
    %c0_i32_1 = arith.constant 0 : i32
    return %c0_i32, %c0_i32_0 : i32, i32
  }
  func.func @transform_4(%arg0: i32, %arg1: i32, %arg2: i32) -> (i32, i32) {
    %c0_i32 = arith.constant 0 : i32
    %c0_i32_0 = arith.constant 0 : i32
    %c0_i32_1 = arith.constant 0 : i32
    return %c0_i32, %c0_i32_0 : i32, i32
  }
  func.func @transform_5(%arg0: i32, %arg1: i32, %arg2: i32) -> (i32, i32) {
    %c0_i32 = arith.constant 0 : i32
    %c0_i32_0 = arith.constant 0 : i32
    %c0_i32_1 = arith.constant 0 : i32
    return %c0_i32, %c0_i32_0 : i32, i32
  }
  func.func @transform_6(%arg0: i32, %arg1: i32, %arg2: i32) -> (i32, i32, i32) {
    %c0_i32 = arith.constant 0 : i32
    %c0_i32_0 = arith.constant 0 : i32
    return %arg0, %arg1, %c0_i32 : i32, i32, i32
  }
}

</mosaic_0001>

<llo_original>
// kernel: tpu_custom_call.1
$region0: #{tpu_custom_call.1}
  #allocation0 [shape = 'u32[]', space=smem, size = 0x4, offset = 0x4, fixed_abs, tag = 'smem constant byte address 0x4 - core index']
  #allocation1 [shape = 'u32[72,128]{1,0:T(1,128)}', space=vmem, size = 0x9000, scoped, tag = 'internal scratch']
  #allocation2 [shape = 'bf16[32,32]{1,0:T(8,128)(2,1)}', space=vmem, size = 0x2000, scoped, tag = 'scratch operand']
  #allocation3 [shape = 'f32[32,1]{1,0:T(8,128)}', space=vmem, size = 0x4000, scoped, tag = 'scratch operand']
  #allocation4 [shape = 'f32[32,1]{1,0:T(8,128)}', space=vmem, size = 0x4000, scoped, tag = 'scratch operand']
  #allocation5 [shape = 'f32[32,32]{1,0:T(8,128)}', space=vmem, size = 0x4000, scoped, tag = 'scratch operand']
  %s0 = inlined_call_operand.vmem [shape: bf16[2,64,32], index: 0, kind: input, shape index: {}]
  %s1 = inlined_call_operand.vmem [shape: bf16[2,64,32], index: 1, kind: input, shape index: {}]
  %s2 = inlined_call_operand.vmem [shape: bf16[32,32], index: 2, kind: input, shape index: {}]
  %s3 = inlined_call_operand.vmem [shape: bf16[32,64], index: 3, kind: input, shape index: {}]
  %s4 = inlined_call_operand.vmem [shape: f32[1,32], index: 4, kind: input, shape index: {}]
  %s5 = inlined_call_operand.vmem [shape: f32[1,64], index: 5, kind: input, shape index: {}]
  %s6 = inlined_call_operand.vmem [shape: f32[2,64,32], index: 6, kind: output, shape index: {}]
  %s7 = sld [smem:[#allocation0]]
  $region65: #{tpu_custom_call.1} parent=0
    _
  %s9 = ssub.s32 1, %s7
  %s10 = scalar_select 0, %s9, %s7
  loop: start=0, step=1, limit=10
  $region2: #{tpu_custom_call.1} parent=0 // loop_pre_header
    _
  $region3: #{tpu_custom_call.1} parent=0 // loop_header
    %s12 = sphi 0, %s16
    %p13 = scmp.ge.s32.totalorder %s12, 10
    %s19 = sphi 0, %s38
    %s20 = sphi 0, %s34
    %s21 = sphi 0, %s30
    %s22 = sphi 0, %s19
    %s23 = sphi 0, %s20
    %s24 = sphi 0, %s21
    %s25 = sphi 0, %s22
    %s26 = sphi 0, %s23
    %s27 = sphi 0, %s24
    %s43 = sphi 0, %s45
    %s46 = sphi 0, %s43
    %s47 = sphi 0, %s46
    %s63 = sphi 0, %s47
    %s71 = sphi 0, %s73
    %s74 = sphi 0, %s71
    %s75 = sphi 0, %s74
    %s91 = sphi 0, %s75
    %s95 = sphi 0, %s95
    %s97 = sphi 0, %s95
    %s98 = sphi 0, %s97
    %s112 = sphi 0, %s98
    %s116 = sphi 0, %s116
    %s118 = sphi 0, %s116
    %s119 = sphi 0, %s118
    %s133 = sphi 0, %s119
    %s137 = sphi 0, %s137
    %s139 = sphi 0, %s137
    %s140 = sphi 0, %s139
    %s154 = sphi 0, %s140
    %s158 = sphi 0, %s158
    %s160 = sphi 0, %s158
    %s161 = sphi 0, %s160
    %s175 = sphi 0, %s161
    %s183 = sphi 0, %s185
    %s186 = sphi 0, %s183
    %s187 = sphi 0, %s186
    %s203 = sphi 0, %s187
  $region4: #{tpu_custom_call.1} parent=0 // loop_header_branch
    %15 = sbr.rel (%p13) target = $region8
  $region5: #{tpu_custom_call.1} parent=0 // loop_body
    %s17 = ssub.s32 %s12, 1
    %s18 = ssub.s32 %s12, 2
    %s28 = sadd.s32 1, %s21
    %p29 = scmp.ge.s32.totalorder %s28, 2
    %s30 = scalar_select %p29, 0, %s28
    %s31 = sadd.s32 1, %s20
    %s32 = scalar_select %p29, %s31, %s20
    %p33 = scmp.ge.s32.totalorder %s32, 2
    %s34 = scalar_select %p33, 0, %s32
    %s35 = sadd.s32 1, %s19
    %s36 = scalar_select %p33, %s35, %s19
    %p37 = scmp.ge.s32.totalorder %s36, 2
    %s38 = scalar_select %p37, 0, %s36
    %s39 = ssub.s32 %s19, %s38
    %s40 = ssub.s32 %s20, %s34
    %s41 = sor.u32 %s39, %s40
    %p42 = scmp.eq.s32.totalorder %s41, 0
    %s44 = sadd.s32 %s43, 1
    %s45 = scalar_select %p42, %s43, %s44
    %p48 = pneg %p42
    %p49 = scmp.eq.s32.totalorder %s12, 7
    %p50 = por %p48, %p49
    %p51 = scmp.ne.s32.totalorder %s43, %s46
    %p52 = scmp.eq.s32.totalorder %s12, 0
    %p53 = por %p51, %p52
    %p54 = scmp.ne.s32.totalorder %s43, %s46
    %p55 = scmp.eq.s32.totalorder %s17, 7
    %p56 = por %p54, %p55
    %p57 = scmp.ne.s32.totalorder %s46, %s47
    %p58 = scmp.eq.s32.totalorder %s17, 0
    %p59 = por %p57, %p58
    %p60 = scmp.ne.s32.totalorder %s46, %s47
    %p61 = scmp.eq.s32.totalorder %s18, 7
    %p62 = por %p60, %p61
    %p64 = scmp.ne.s32.totalorder %s47, %s63
    %p65 = scmp.eq.s32.totalorder %s18, 0
    %p66 = por %p64, %p65
    %s67 = ssub.s32 %s19, %s38
    %s68 = ssub.s32 %s21, %s30
    %s69 = sor.u32 %s67, %s68
    %p70 = scmp.eq.s32.totalorder %s69, 0
    %s72 = sadd.s32 %s71, 1
    %s73 = scalar_select %p70, %s71, %s72
    %p76 = pneg %p70
    %p77 = scmp.eq.s32.totalorder %s12, 7
    %p78 = por %p76, %p77
    %p79 = scmp.ne.s32.totalorder %s71, %s74
    %p80 = scmp.eq.s32.totalorder %s12, 0
    %p81 = por %p79, %p80
    %p82 = scmp.ne.s32.totalorder %s71, %s74
    %p83 = scmp.eq.s32.totalorder %s17, 7
    %p84 = por %p82, %p83
    %p85 = scmp.ne.s32.totalorder %s74, %s75
    %p86 = scmp.eq.s32.totalorder %s17, 0
    %p87 = por %p85, %p86
    %p88 = scmp.ne.s32.totalorder %s74, %s75
    %p89 = scmp.eq.s32.totalorder %s18, 7
    %p90 = por %p88, %p89
    %p92 = scmp.ne.s32.totalorder %s75, %s91
    %p93 = scmp.eq.s32.totalorder %s18, 0
    %p94 = por %p92, %p93
    %s96 = sadd.s32 %s95, 1
    %p99 = scmp.eq.s32.totalorder %s12, 7
    %p100 = scmp.ne.s32.totalorder %s95, %s97
    %p101 = scmp.eq.s32.totalorder %s12, 0
    %p102 = por %p100, %p101
    %p103 = scmp.ne.s32.totalorder %s95, %s97
    %p104 = scmp.eq.s32.totalorder %s17, 7
    %p105 = por %p103, %p104
    %p106 = scmp.ne.s32.totalorder %s97, %s98
    %p107 = scmp.eq.s32.totalorder %s17, 0
    %p108 = por %p106, %p107
    %p109 = scmp.ne.s32.totalorder %s97, %s98
    %p110 = scmp.eq.s32.totalorder %s18, 7
    %p111 = por %p109, %p110
    %p113 = scmp.ne.s32.totalorder %s98, %s112
    %p114 = scmp.eq.s32.totalorder %s18, 0
    %p115 = por %p113, %p114
    %s117 = sadd.s32 %s116, 1
    %p120 = scmp.eq.s32.totalorder %s12, 7
    %p121 = scmp.ne.s32.totalorder %s116, %s118
    %p122 = scmp.eq.s32.totalorder %s12, 0
    %p123 = por %p121, %p122
    %p124 = scmp.ne.s32.totalorder %s116, %s118
    %p125 = scmp.eq.s32.totalorder %s17, 7
    %p126 = por %p124, %p125
    %p127 = scmp.ne.s32.totalorder %s118, %s119
    %p128 = scmp.eq.s32.totalorder %s17, 0
    %p129 = por %p127, %p128
    %p130 = scmp.ne.s32.totalorder %s118, %s119
    %p131 = scmp.eq.s32.totalorder %s18, 7
    %p132 = por %p130, %p131
    %p134 = scmp.ne.s32.totalorder %s119, %s133
    %p135 = scmp.eq.s32.totalorder %s18, 0
    %p136 = por %p134, %p135
    %s138 = sadd.s32 %s137, 1
    %p141 = scmp.eq.s32.totalorder %s12, 7
    %p142 = scmp.ne.s32.totalorder %s137, %s139
    %p143 = scmp.eq.s32.totalorder %s12, 0
    %p144 = por %p142, %p143
    %p145 = scmp.ne.s32.totalorder %s137, %s139
    %p146 = scmp.eq.s32.totalorder %s17, 7
    %p147 = por %p145, %p146
    %p148 = scmp.ne.s32.totalorder %s139, %s140
    %p149 = scmp.eq.s32.totalorder %s17, 0
    %p150 = por %p148, %p149
    %p151 = scmp.ne.s32.totalorder %s139, %s140
    %p152 = scmp.eq.s32.totalorder %s18, 7
    %p153 = por %p151, %p152
    %p155 = scmp.ne.s32.totalorder %s140, %s154
    %p156 = scmp.eq.s32.totalorder %s18, 0
    %p157 = por %p155, %p156
    %s159 = sadd.s32 %s158, 1
    %p162 = scmp.eq.s32.totalorder %s12, 7
    %p163 = scmp.ne.s32.totalorder %s158, %s160
    %p164 = scmp.eq.s32.totalorder %s12, 0
    %p165 = por %p163, %p164
    %p166 = scmp.ne.s32.totalorder %s158, %s160
    %p167 = scmp.eq.s32.totalorder %s17, 7
    %p168 = por %p166, %p167
    %p169 = scmp.ne.s32.totalorder %s160, %s161
    %p170 = scmp.eq.s32.totalorder %s17, 0
    %p171 = por %p169, %p170
    %p172 = scmp.ne.s32.totalorder %s160, %s161
    %p173 = scmp.eq.s32.totalorder %s18, 7
    %p174 = por %p172, %p173
    %p176 = scmp.ne.s32.totalorder %s161, %s175
    %p177 = scmp.eq.s32.totalorder %s18, 0
    %p178 = por %p176, %p177
    %s179 = ssub.s32 %s19, %s38
    %s180 = ssub.s32 %s20, %s34
    %s181 = sor.u32 %s179, %s180
    %p182 = scmp.eq.s32.totalorder %s181, 0
    %s184 = sadd.s32 %s183, 1
    %s185 = scalar_select %p182, %s183, %s184
    %p188 = pneg %p182
    %p189 = scmp.eq.s32.totalorder %s12, 7
    %p190 = por %p188, %p189
    %p191 = scmp.ne.s32.totalorder %s183, %s186
    %p192 = scmp.eq.s32.totalorder %s12, 0
    %p193 = por %p191, %p192
    %p194 = scmp.ne.s32.totalorder %s183, %s186
    %p195 = scmp.eq.s32.totalorder %s17, 7
    %p196 = por %p194, %p195
    %p197 = scmp.ne.s32.totalorder %s186, %s187
    %p198 = scmp.eq.s32.totalorder %s17, 0
    %p199 = por %p197, %p198
    %p200 = scmp.ne.s32.totalorder %s186, %s187
    %p201 = scmp.eq.s32.totalorder %s18, 7
    %p202 = por %p200, %p201
    %p204 = scmp.ne.s32.totalorder %s187, %s203
    %p205 = scmp.eq.s32.totalorder %s18, 0
    %p206 = por %p204, %p205
    %p207 = scmp.le.s32.totalorder 1, %s12
    %p208 = scmp.lt.s32.totalorder %s12, 9
    %p209 = pnand %p207, %p208
    %p210 = pneg %p209
    // Predicated region
    $region9: #{tpu_custom_call.1} parent=5 // pred_check
      _
    $region10: #{tpu_custom_call.1} parent=5 // pred_check_branch
      %212 = sbr.rel (%p209) target = $region12
    $region11: #{tpu_custom_call.1} parent=5 // pred_region
      %s213 = ssub.s32 %s12, 1
      // Predicated region
      $region13: #{tpu_custom_call.1} parent=11 // pred_check
        %p214 = pneg %p108
      $region14: #{tpu_custom_call.1} parent=11 // pred_check_branch
        %216 = sbr.rel (%p214) target = $region16
      $region15: #{tpu_custom_call.1} parent=11 // pred_region
        _
      $region16: #{tpu_custom_call.1} parent=11 // pred_fallthru
        _
      // Predicated region
      $region17: #{tpu_custom_call.1} parent=11 // pred_check
        %p217 = pneg %p129
      $region18: #{tpu_custom_call.1} parent=11 // pred_check_branch
        %219 = sbr.rel (%p217) target = $region20
      $region19: #{tpu_custom_call.1} parent=11 // pred_region
        _
      $region20: #{tpu_custom_call.1} parent=11 // pred_fallthru
        _
      // Predicated region
      $region21: #{tpu_custom_call.1} parent=11 // pred_check
        %p220 = pneg %p150
      $region22: #{tpu_custom_call.1} parent=11 // pred_check_branch
        %222 = sbr.rel (%p220) target = $region24
      $region23: #{tpu_custom_call.1} parent=11 // pred_region
        _
      $region24: #{tpu_custom_call.1} parent=11 // pred_fallthru
        _
      // Predicated region
      $region25: #{tpu_custom_call.1} parent=11 // pred_check
        %p223 = pneg %p171
      $region26: #{tpu_custom_call.1} parent=11 // pred_check_branch
        %225 = sbr.rel (%p223) target = $region28
      $region27: #{tpu_custom_call.1} parent=11 // pred_region
        _
      $region28: #{tpu_custom_call.1} parent=11 // pred_fallthru
        _
    $region12: #{tpu_custom_call.1} parent=5 // pred_fallthru
      _
    %p226 = scmp.lt.s32.totalorder %s12, 8
    // Predicated region
    $region29: #{tpu_custom_call.1} parent=5 // pred_check
      %p227 = pneg %p226
    $region30: #{tpu_custom_call.1} parent=5 // pred_check_branch
      %229 = sbr.rel (%p227) target = $region32
    $region31: #{tpu_custom_call.1} parent=5 // pred_region
      // Predicated region
      $region33: #{tpu_custom_call.1} parent=31 // pred_check
        %p230 = pneg %p53
      $region34: #{tpu_custom_call.1} parent=31 // pred_check_branch
        %232 = sbr.rel (%p230) target = $region36
      $region35: #{tpu_custom_call.1} parent=31 // pred_region
        %s233 = smul.u32 4, %s20
        %p234 = scmp.lt.s32.totalorder %s19, 1
        %s235 = scalar_select %p234, %s19, 1
        %p236 = scmp.lt.s32.totalorder %s233, 7
        %s237 = scalar_select %p236, %s233, 7
        %s238 = smul.addr %s235, 8
        %s239 = sadd.s32 %s237, %s238
        %s240 = smul.addr %s239, 4
        %s241 = scalar_lea.vmem %s0, %s240
        %s242 = smul.u32 4, %s20
      $region36: #{tpu_custom_call.1} parent=31 // pred_fallthru
        _
      // Predicated region
      $region37: #{tpu_custom_call.1} parent=31 // pred_check
        %p243 = pneg %p81
      $region38: #{tpu_custom_call.1} parent=31 // pred_check_branch
        %245 = sbr.rel (%p243) target = $region40
      $region39: #{tpu_custom_call.1} parent=31 // pred_region
        %s246 = smul.u32 4, %s21
        %p247 = scmp.lt.s32.totalorder %s19, 1
        %s248 = scalar_select %p247, %s19, 1
        %p249 = scmp.lt.s32.totalorder %s246, 7
        %s250 = scalar_select %p249, %s246, 7
        %s251 = smul.addr %s248, 8
        %s252 = sadd.s32 %s250, %s251
        %s253 = smul.addr %s252, 4
        %s254 = scalar_lea.vmem %s1, %s253
        %s255 = smul.u32 4, %s21
      $region40: #{tpu_custom_call.1} parent=31 // pred_fallthru
        _
    $region32: #{tpu_custom_call.1} parent=5 // pred_fallthru
      _
    %p256 = scmp.le.s32.totalorder 1, %s12
    %p257 = scmp.lt.s32.totalorder %s12, 9
    %p258 = pnand %p256, %p257
    %p259 = pneg %p258
    // Predicated region
    $region41: #{tpu_custom_call.1} parent=5 // pred_check
      _
    $region42: #{tpu_custom_call.1} parent=5 // pred_check_branch
      %261 = sbr.rel (%p258) target = $region44
    $region43: #{tpu_custom_call.1} parent=5 // pred_region
      %s262 = ssub.s32 %s12, 1
      %s263 = smul.u32 4, %s23
      %p264 = scmp.lt.s32.totalorder %s22, 1
      %s265 = scalar_select %p264, %s22, 1
      %p266 = scmp.lt.s32.totalorder %s263, 7
      %s267 = scalar_select %p266, %s263, 7
      %s268 = smul.addr %s265, 8
      %s269 = sadd.s32 %s267, %s268
      %s270 = smul.addr %s269, 4
      %s271 = scalar_lea.vmem %s0, %s270
      %p272 = pneg %p59
      %p273 = pneg %p56
      %s274 = smul.u32 4, %s24
      %p275 = scmp.lt.s32.totalorder %s22, 1
      %s276 = scalar_select %p275, %s22, 1
      %p277 = scmp.lt.s32.totalorder %s274, 7
      %s278 = scalar_select %p277, %s274, 7
      %s279 = smul.addr %s276, 8
      %s280 = sadd.s32 %s278, %s279
      %s281 = smul.addr %s280, 4
      %s282 = scalar_lea.vmem %s1, %s281
      %p283 = pneg %p87
      %p284 = pneg %p84
      %p285 = pneg %p108
      %p286 = pneg %p105
      %p287 = pneg %p129
      %p288 = pneg %p126
      %p289 = pneg %p150
      %p290 = pneg %p147
      %p291 = pneg %p171
      %p292 = pneg %p168
      %p293 = pneg %p199
      %p294 = pneg %p196
      %s295 = smul.u32 4, %s23
      %p296 = scmp.lt.s32.totalorder %s22, 1
      %s297 = scalar_select %p296, %s22, 1
      %p298 = scmp.lt.s32.totalorder %s295, 7
      %s299 = scalar_select %p298, %s295, 7
      %s300 = smul.addr %s297, 8
      %s301 = sadd.s32 %s299, %s300
      %s302 = smul.addr %s301, 8
      %s303 = scalar_lea.vmem %s6, %s302
      %s304 = smul.u32 4, %s23
      %p305 = scmp.lt.s32.totalorder %s22, 1
      %s306 = scalar_select %p305, %s22, 1
      %p307 = scmp.lt.s32.totalorder %s304, 7
      %s308 = scalar_select %p307, %s304, 7
      %s309 = smul.addr %s306, 8
      %s310 = sadd.s32 %s308, %s309
      %s311 = smul.addr %s310, 4
      %s312 = scalar_lea.vmem %s0, %s311
      %s313 = smul.u32 4, %s23
      %s314 = smul.u32 4, %s24
      %p315 = scmp.lt.s32.totalorder %s22, 1
      %s316 = scalar_select %p315, %s22, 1
      %p317 = scmp.lt.s32.totalorder %s314, 7
      %s318 = scalar_select %p317, %s314, 7
      %s319 = smul.addr %s316, 8
      %s320 = sadd.s32 %s318, %s319
      %s321 = smul.addr %s320, 4
      %s322 = scalar_lea.vmem %s1, %s321
      %s323 = smul.u32 4, %s24
      %s324 = smul.u32 4, %s23
      %p325 = scmp.lt.s32.totalorder %s22, 1
      %s326 = scalar_select %p325, %s22, 1
      %p327 = scmp.lt.s32.totalorder %s324, 7
      %s328 = scalar_select %p327, %s324, 7
      %s329 = smul.addr %s326, 8
      %s330 = sadd.s32 %s328, %s329
      %s331 = smul.addr %s330, 8
      %s332 = scalar_lea.vmem %s6, %s331
      %s333 = smul.u32 4, %s23
      %p335 = scmp.eq.s32.totalorder %s24, 0
      // Predicated region
      $region45: #{tpu_custom_call.1} parent=43 // pred_check
        %p336 = pneg %p335
      $region46: #{tpu_custom_call.1} parent=43 // pred_check_branch
        %338 = sbr.rel (%p336) target = $region48
      $region47: #{tpu_custom_call.1} parent=43 // pred_region
        %vm339 = vcmask 7168
        %340 = vst.msk [vmem:[#allocation3] sm:$0xff] %vm339, -inf
        %341 = vst.msk [vmem:[#allocation3 + $0x8] sm:$0xff] %vm339, -inf
        %342 = vst.msk [vmem:[#allocation3 + $0x10] sm:$0xff] %vm339, -inf
        %343 = vst.msk [vmem:[#allocation3 + $0x18] sm:$0xff] %vm339, -inf
        %344 = vst.msk [vmem:[#allocation4] sm:$0xff] %vm339, 0.0
        %345 = vst.msk [vmem:[#allocation4 + $0x8] sm:$0xff] %vm339, 0.0
        %346 = vst.msk [vmem:[#allocation4 + $0x10] sm:$0xff] %vm339, 0.0
        %347 = vst.msk [vmem:[#allocation4 + $0x18] sm:$0xff] %vm339, 0.0
        %vm348 = vcmask 261120
        %349 = vst.msk [vmem:[#allocation5] sm:$0xff] %vm348, 0.0
        %350 = vst.msk [vmem:[#allocation5 + $0x8] sm:$0xff] %vm348, 0.0
        %351 = vst.msk [vmem:[#allocation5 + $0x10] sm:$0xff] %vm348, 0.0
        %352 = vst.msk [vmem:[#allocation5 + $0x18] sm:$0xff] %vm348, 0.0
        %v353 = vld [vmem:[%s312] sm:$0xf]
        %v354 = vld [vmem:[%s312 + $0x4] sm:$0xf]
        %v355 = vld [vmem:[%s312 + $0x8] sm:$0xf]
        %v356 = vld [vmem:[%s312 + $0xc] sm:$0xf]
        %v357 = vld [vmem:[%s2] sm:$0xf]
        %v358 = vld [vmem:[%s2 + $0x4] sm:$0xf]
        %v359 = vld [vmem:[%s2 + $0x8] sm:$0xf]
        %v360 = vld [vmem:[%s2 + $0xc] sm:$0xf]
        %v361 = vld [vmem:[%s4] sm:$0x1]
        %v363 = vperm.slane %v361, 0
        %v369 = vunpack.c.l.b16 %v353
        %v370 = vunpack.c.l.b16 %v354
        %v371 = vunpack.c.l.b16 %v355
        %v372 = vunpack.c.l.b16 %v356
        %v373 = vpack.c.b16 %v370, %v369
        %v374 = vpack.c.b16 %v372, %v371
        %v379 = vunpack.c.l.b16 %v357
        %v380 = vunpack.c.l.b16 %v358
        %v381 = vunpack.c.l.b16 %v359
        %v382 = vunpack.c.l.b16 %v360
        %v383 = vpack.c.b16 %v380, %v379
        %v384 = vpack.c.b16 %v382, %v381
        %v388 = vsel %vm348, %v373, 0
        %v391 = vsel %vm348, %v374, 0
        %393 = vmatpush.bf16.msra.mxu0 0
        %394 = vmatpush.bf16.msra.mxu0 0
        %395 = vmatpush.bf16.msra.mxu0 0
        %396 = vmatpush.bf16.msra.mxu0 0
        %397 = vmatpush.bf16.msra.mxu0 0
        %398 = vmatpush.bf16.msra.mxu0 0
        %399 = vmatpush.bf16.msra.mxu0 %v384
        %400 = vmatpush.bf16.msra.mxu0 %v383
        %401 = vmatmul.bf16.gmra.mxu0 %v388
        %v402 = vpop.f32.mrf.mxu0
        %v403 = vadd.f32 %v363, %v402
        %v404 = vpop.f32.mrf.mxu0
        %v405 = vadd.f32 %v363, %v404
        %406 = vmatmul.bf16.gmra.mxu0 %v391
        %v407 = vpop.f32.mrf.mxu0
        %v408 = vadd.f32 %v363, %v407
        %v409 = vpop.f32.mrf.mxu0
        %v410 = vadd.f32 %v363, %v409
        %411 = vdwg.mxu0
        %v412 = vmul.f32 %v403, 0.17677669
        %v413 = vmul.f32 %v405, 0.17677669
        %v414 = vmul.f32 %v408, 0.17677669
        %v415 = vmul.f32 %v410, 0.17677669
        %v416 = vpack.c.bf16 %v412, %v412
        %v417 = vpack.c.bf16 %v413, %v413
        %v418 = vpack.c.bf16 %v414, %v414
        %v419 = vpack.c.bf16 %v415, %v415
        %vm420 = vcmask 257024
        %421 = vst.msk [vmem:[#allocation2] sm:$0xf] %vm420, %v416
        %422 = vst.msk [vmem:[#allocation2 + $0x4] sm:$0xf] %vm420, %v417
        %423 = vst.msk [vmem:[#allocation2 + $0x8] sm:$0xf] %vm420, %v418
        %424 = vst.msk [vmem:[#allocation2 + $0xc] sm:$0xf] %vm420, %v419
      $region48: #{tpu_custom_call.1} parent=43 // pred_fallthru
        _
      %v425 = vld [vmem:[%s322] sm:$0xf]
      %v426 = vld [vmem:[%s322 + $0x4] sm:$0xf]
      %v427 = vld [vmem:[%s322 + $0x8] sm:$0xf]
      %v428 = vld [vmem:[%s322 + $0xc] sm:$0xf]
      %v429 = vld [vmem:[%s3] sm:$0xf]
      %v430 = vld [vmem:[%s3 + $0x4] sm:$0xf]
      %v431 = vld [vmem:[%s3 + $0x8] sm:$0xf]
      %v432 = vld [vmem:[%s3 + $0xc] sm:$0xf]
      %v433 = vld [vmem:[%s5] sm:$0x1]
      %v435 = vperm.slane %v433, 0
      %v441 = vunpack.c.l.b16 %v425
      %v442 = vunpack.c.l.b16 %v426
      %v443 = vunpack.c.l.b16 %v427
      %v444 = vunpack.c.l.b16 %v428
      %v445 = vpack.c.b16 %v442, %v441
      %v446 = vpack.c.b16 %v444, %v443
      %v451 = vunpack.c.l.b16 %v429
      %v452 = vunpack.c.l.b16 %v430
      %v453 = vunpack.c.l.b16 %v431
      %v454 = vunpack.c.l.b16 %v432
      %v455 = vpack.c.b16 %v452, %v451
      %v456 = vpack.c.b16 %v454, %v453
      %vm459 = vcmask 261120
      %v461 = vsel %vm459, %v445, 0
      %v464 = vsel %vm459, %v446, 0
      %466 = vmatpush.bf16.msra.mxu0 0
      %467 = vmatpush.bf16.msra.mxu0 0
      %468 = vmatpush.bf16.msra.mxu0 0
      %469 = vmatpush.bf16.msra.mxu0 0
      %470 = vmatpush.bf16.msra.mxu0 0
      %471 = vmatpush.bf16.msra.mxu0 0
      %472 = vmatpush.bf16.msra.mxu0 %v456
      %473 = vmatpush.bf16.msra.mxu0 %v455
      %474 = vmatmul.bf16.gmra.mxu0 %v461
      %v475 = vpop.f32.mrf.mxu0
      %v476 = vadd.f32 %v435, %v475
      %v477 = vpop.f32.mrf.mxu0
      %v478 = vadd.f32 %v435, %v477
      %479 = vmatmul.bf16.gmra.mxu0 %v464
      %v480 = vpop.f32.mrf.mxu0
      %v481 = vadd.f32 %v435, %v480
      %v482 = vpop.f32.mrf.mxu0
      %v483 = vadd.f32 %v435, %v482
      %484 = vdwg.mxu0
      %v485 = vpack.c.bf16 %v478, %v476
      %v486 = vpack.c.bf16 %v483, %v481
      %v487 = vld [vmem:[#allocation2] sm:$0xf]
      %v488 = vld [vmem:[#allocation2 + $0x4] sm:$0xf]
      %v489 = vld [vmem:[#allocation2 + $0x8] sm:$0xf]
      %v490 = vld [vmem:[#allocation2 + $0xc] sm:$0xf]
      %v495 = vunpack.c.l.b16 %v487
      %v496 = vunpack.c.l.b16 %v488
      %v497 = vunpack.c.l.b16 %v489
      %v498 = vunpack.c.l.b16 %v490
      %v499 = vpack.c.b16 %v496, %v495
      %v500 = vpack.c.b16 %v498, %v497
      %v502 = vsel %vm459, %v499, 0
      %v505 = vsel %vm459, %v500, 0
      %v508 = vsel %vm459, %v485, 0
      %v511 = vsel %vm459, %v486, 0
      %513 = vmatpush.bf16.xpose.msra.mxu0 0
      %514 = vmatpush.bf16.xpose.msra.mxu0 0
      %515 = vmatpush.bf16.xpose.msra.mxu0 0
      %516 = vmatpush.bf16.xpose.msra.mxu0 0
      %517 = vmatpush.bf16.xpose.msra.mxu0 0
      %518 = vmatpush.bf16.xpose.msra.mxu0 0
      %519 = vmatpush.bf16.xpose.msra.mxu0 %v511
      %520 = vmatpush.bf16.xpose.msra.mxu0 %v508
      %521 = vmatmul.bf16.gmra.mxu0 %v502
      %v522 = vpop.f32.mrf.mxu0
      %v523 = vadd.f32 0.0, %v522
      %v524 = vpop.f32.mrf.mxu0
      %v525 = vadd.f32 0.0, %v524
      %526 = vmatmul.bf16.gmra.mxu0 %v505
      %v527 = vpop.f32.mrf.mxu0
      %v528 = vadd.f32 0.0, %v527
      %v529 = vpop.f32.mrf.mxu0
      %v530 = vadd.f32 0.0, %v529
      %531 = vdwg.mxu0
      %v532 = vld [vmem:[#allocation3] sm:$0xff]
      %v533 = vld [vmem:[#allocation3 + $0x8] sm:$0xff]
      %v534 = vld [vmem:[#allocation3 + $0x10] sm:$0xff]
      %v535 = vld [vmem:[#allocation3 + $0x18] sm:$0xff]
      %v536 = vsel %vm459, %v523, -inf
      %537 = vmax.xlane.f32.xlu0 %v536
      %v538 = vpop.xlane.xlu0 %537
      %v539 = vsel %vm459, %v525, -inf
      %540 = vmax.xlane.f32.xlu0 %v539
      %v541 = vpop.xlane.xlu0 %540
      %v542 = vsel %vm459, %v528, -inf
      %543 = vmax.xlane.f32.xlu0 %v542
      %v544 = vpop.xlane.xlu0 %543
      %v545 = vsel %vm459, %v530, -inf
      %546 = vmax.xlane.f32.xlu0 %v545
      %v547 = vpop.xlane.xlu0 %546
      %v548 = vmax.f32 %v532, %v538
      %v549 = vmax.f32 %v533, %v541
      %v550 = vmax.f32 %v534, %v544
      %v551 = vmax.f32 %v535, %v547
      %v552 = vsub.f32 %v532, %v548
      %v553 = vsub.f32 %v533, %v549
      %v554 = vsub.f32 %v534, %v550
      %v555 = vsub.f32 %v535, %v551
      %v556 = vmul.f32 %v552, 1.442695
      %v557 = vpow.pop %v556
      %v558 = vmul.f32 %v553, 1.442695
      %v559 = vpow.pop %v558
      %v560 = vmul.f32 %v554, 1.442695
      %v561 = vpow.pop %v560
      %v562 = vmul.f32 %v555, 1.442695
      %v563 = vpow.pop %v562
      %565 = vset.pattern.permute.xlu0 0
      %566 = vperm.xlu0 %565, %v548
      %v567 = vpop.permute.xlu0 %566
      %570 = vset.pattern.permute.xlu0 0
      %571 = vperm.xlu0 %570, %v549
      %v572 = vpop.permute.xlu0 %571
      %575 = vset.pattern.permute.xlu0 0
      %576 = vperm.xlu0 %575, %v550
      %v577 = vpop.permute.xlu0 %576
      %580 = vset.pattern.permute.xlu0 0
      %581 = vperm.xlu0 %580, %v551
      %v582 = vpop.permute.xlu0 %581
      %v584 = vsub.f32 %v523, %v567
      %v585 = vsub.f32 %v525, %v572
      %v586 = vsub.f32 %v528, %v577
      %v587 = vsub.f32 %v530, %v582
      %v588 = vmul.f32 %v584, 1.442695
      %v589 = vpow.pop %v588
      %v590 = vmul.f32 %v585, 1.442695
      %v591 = vpow.pop %v590
      %v592 = vmul.f32 %v586, 1.442695
      %v593 = vpow.pop %v592
      %v594 = vmul.f32 %v587, 1.442695
      %v595 = vpow.pop %v594
      %v596 = vld [vmem:[#allocation4] sm:$0xff]
      %v597 = vld [vmem:[#allocation4 + $0x8] sm:$0xff]
      %v598 = vld [vmem:[#allocation4 + $0x10] sm:$0xff]
      %v599 = vld [vmem:[#allocation4 + $0x18] sm:$0xff]
      %v600 = vmul.f32 %v557, %v596
      %v601 = vmul.f32 %v559, %v597
      %v602 = vmul.f32 %v561, %v598
      %v603 = vmul.f32 %v563, %v599
      %v604 = vsel %vm459, %v589, 0.0
      %605 = vadd.xlane.f32.xlu0 %v604
      %v606 = vpop.xlane.xlu0 %605
      %v607 = vsel %vm459, %v591, 0.0
      %608 = vadd.xlane.f32.xlu0 %v607
      %v609 = vpop.xlane.xlu0 %608
      %v610 = vsel %vm459, %v593, 0.0
      %611 = vadd.xlane.f32.xlu0 %v610
      %v612 = vpop.xlane.xlu0 %611
      %v613 = vsel %vm459, %v595, 0.0
      %614 = vadd.xlane.f32.xlu0 %v613
      %v615 = vpop.xlane.xlu0 %614
      %v616 = vadd.f32 %v600, %v606
      %v617 = vadd.f32 %v601, %v609
      %v618 = vadd.f32 %v602, %v612
      %v619 = vadd.f32 %v603, %v615
      %vm620 = vcmask 7168
      %621 = vst.msk [vmem:[#allocation4] sm:$0xff] %vm620, %v616
      %622 = vst.msk [vmem:[#allocation4 + $0x8] sm:$0xff] %vm620, %v617
      %623 = vst.msk [vmem:[#allocation4 + $0x10] sm:$0xff] %vm620, %v618
      %624 = vst.msk [vmem:[#allocation4 + $0x18] sm:$0xff] %vm620, %v619
      %v625 = vld [vmem:[#allocation5] sm:$0xff]
      %v626 = vld [vmem:[#allocation5 + $0x8] sm:$0xff]
      %v627 = vld [vmem:[#allocation5 + $0x10] sm:$0xff]
      %v628 = vld [vmem:[#allocation5 + $0x18] sm:$0xff]
      %630 = vset.pattern.permute.xlu0 0
      %631 = vperm.xlu0 %630, %v557
      %v632 = vpop.permute.xlu0 %631
      %635 = vset.pattern.permute.xlu0 0
      %636 = vperm.xlu0 %635, %v559
      %v637 = vpop.permute.xlu0 %636
      %640 = vset.pattern.permute.xlu0 0
      %641 = vperm.xlu0 %640, %v561
      %v642 = vpop.permute.xlu0 %641
      %645 = vset.pattern.permute.xlu0 0
      %646 = vperm.xlu0 %645, %v563
      %v647 = vpop.permute.xlu0 %646
      %v649 = vmul.f32 %v632, %v625
      %v650 = vmul.f32 %v637, %v626
      %v651 = vmul.f32 %v642, %v627
      %v652 = vmul.f32 %v647, %v628
      %v653 = vpack.c.bf16 %v591, %v589
      %v654 = vpack.c.bf16 %v595, %v593
      %657 = vrot.lane.b32.xlu0 %v485, 96
      %v658 = vpop.permute.xlu0 %657
      %659 = vrot.lane.b32.xlu0 %v486, 96
      %v660 = vpop.permute.xlu0 %659
      %v664 = vsel %vm459, %v653, 0
      %v667 = vsel %vm459, %v654, 0
      %669 = vmatpush.bf16.msra.mxu0 0
      %670 = vmatpush.bf16.msra.mxu0 0
      %671 = vmatpush.bf16.msra.mxu0 0
      %672 = vmatpush.bf16.msra.mxu0 0
      %673 = vmatpush.bf16.msra.mxu0 0
      %674 = vmatpush.bf16.msra.mxu0 0
      %675 = vmatpush.bf16.msra.mxu0 %v660
      %676 = vmatpush.bf16.msra.mxu0 %v658
      %677 = vmatmul.bf16.gmra.mxu0 %v664
      %v678 = vpop.f32.mrf.mxu0
      %v679 = vadd.f32 0.0, %v678
      %v680 = vpop.f32.mrf.mxu0
      %v681 = vadd.f32 0.0, %v680
      %682 = vmatmul.bf16.gmra.mxu0 %v667
      %v683 = vpop.f32.mrf.mxu0
      %v684 = vadd.f32 0.0, %v683
      %v685 = vpop.f32.mrf.mxu0
      %v686 = vadd.f32 0.0, %v685
      %687 = vdwg.mxu0
      %v688 = vadd.f32 %v649, %v679
      %v689 = vadd.f32 %v650, %v681
      %v690 = vadd.f32 %v651, %v684
      %v691 = vadd.f32 %v652, %v686
      %692 = vst.msk [vmem:[#allocation5] sm:$0xff] %vm459, %v688
      %693 = vst.msk [vmem:[#allocation5 + $0x8] sm:$0xff] %vm459, %v689
      %694 = vst.msk [vmem:[#allocation5 + $0x10] sm:$0xff] %vm459, %v690
      %695 = vst.msk [vmem:[#allocation5 + $0x18] sm:$0xff] %vm459, %v691
      %696 = vst.msk [vmem:[#allocation3] sm:$0xff] %vm620, %v548
      %697 = vst.msk [vmem:[#allocation3 + $0x8] sm:$0xff] %vm620, %v549
      %698 = vst.msk [vmem:[#allocation3 + $0x10] sm:$0xff] %vm620, %v550
      %699 = vst.msk [vmem:[#allocation3 + $0x18] sm:$0xff] %vm620, %v551
      %p700 = scmp.eq.s32.totalorder %s24, 1
      // Predicated region
      $region49: #{tpu_custom_call.1} parent=43 // pred_check
        %p701 = pneg %p700
      $region50: #{tpu_custom_call.1} parent=43 // pred_check_branch
        %703 = sbr.rel (%p701) target = $region52
      $region51: #{tpu_custom_call.1} parent=43 // pred_region
        %v704 = vld [vmem:[#allocation4] sm:$0xff]
        %v705 = vld [vmem:[#allocation4 + $0x8] sm:$0xff]
        %v706 = vld [vmem:[#allocation4 + $0x10] sm:$0xff]
        %v707 = vld [vmem:[#allocation4 + $0x18] sm:$0xff]
        %v708 = vrcp.pop %v704
        %v709 = vrcp.pop %v705
        %v710 = vrcp.pop %v706
        %v711 = vrcp.pop %v707
        %v712 = vld [vmem:[#allocation5] sm:$0xff]
        %v713 = vld [vmem:[#allocation5 + $0x8] sm:$0xff]
        %v714 = vld [vmem:[#allocation5 + $0x10] sm:$0xff]
        %v715 = vld [vmem:[#allocation5 + $0x18] sm:$0xff]
        %717 = vset.pattern.permute.xlu0 0
        %718 = vperm.xlu0 %717, %v708
        %v719 = vpop.permute.xlu0 %718
        %722 = vset.pattern.permute.xlu0 0
        %723 = vperm.xlu0 %722, %v709
        %v724 = vpop.permute.xlu0 %723
        %727 = vset.pattern.permute.xlu0 0
        %728 = vperm.xlu0 %727, %v710
        %v729 = vpop.permute.xlu0 %728
        %732 = vset.pattern.permute.xlu0 0
        %733 = vperm.xlu0 %732, %v711
        %v734 = vpop.permute.xlu0 %733
        %v736 = vmul.f32 %v712, %v719
        %v737 = vmul.f32 %v713, %v724
        %v738 = vmul.f32 %v714, %v729
        %v739 = vmul.f32 %v715, %v734
        %740 = vst.msk [vmem:[%s332] sm:$0xff] %vm459, %v736
        %741 = vst.msk [vmem:[%s332 + $0x8] sm:$0xff] %vm459, %v737
        %742 = vst.msk [vmem:[%s332 + $0x10] sm:$0xff] %vm459, %v738
        %743 = vst.msk [vmem:[%s332 + $0x18] sm:$0xff] %vm459, %v739
      $region52: #{tpu_custom_call.1} parent=43 // pred_fallthru
        _
      %s744 = smul.u32 4, %s23
      %p745 = scmp.lt.s32.totalorder %s22, 1
      %s746 = scalar_select %p745, %s22, 1
      %p747 = scmp.lt.s32.totalorder %s744, 7
      %s748 = scalar_select %p747, %s744, 7
      %s749 = smul.addr %s746, 8
      %s750 = sadd.s32 %s748, %s749
      %s751 = smul.addr %s750, 8
      %s752 = scalar_lea.vmem %s6, %s751
      // Predicated region
      $region53: #{tpu_custom_call.1} parent=43 // pred_check
        %p753 = pneg %p196
      $region54: #{tpu_custom_call.1} parent=43 // pred_check_branch
        %755 = sbr.rel (%p753) target = $region56
      $region55: #{tpu_custom_call.1} parent=43 // pred_region
        %s756 = smul.u32 4, %s23
      $region56: #{tpu_custom_call.1} parent=43 // pred_fallthru
        _
    $region44: #{tpu_custom_call.1} parent=5 // pred_fallthru
      _
    %p757 = scmp.le.s32.totalorder 2, %s12
    // Predicated region
    $region57: #{tpu_custom_call.1} parent=5 // pred_check
      %p758 = pneg %p757
    $region58: #{tpu_custom_call.1} parent=5 // pred_check_branch
      %760 = sbr.rel (%p758) target = $region60
    $region59: #{tpu_custom_call.1} parent=5 // pred_region
      %s761 = ssub.s32 %s12, 2
      // Predicated region
      $region61: #{tpu_custom_call.1} parent=59 // pred_check
        %p762 = pneg %p202
      $region62: #{tpu_custom_call.1} parent=59 // pred_check_branch
        %764 = sbr.rel (%p762) target = $region64
      $region63: #{tpu_custom_call.1} parent=59 // pred_region
        %s765 = smul.u32 4, %s26
        %p766 = scmp.lt.s32.totalorder %s25, 1
        %s767 = scalar_select %p766, %s25, 1
        %p768 = scmp.lt.s32.totalorder %s765, 7
        %s769 = scalar_select %p768, %s765, 7
        %s770 = smul.addr %s767, 8
        %s771 = sadd.s32 %s769, %s770
        %s772 = smul.addr %s771, 8
        %s773 = scalar_lea.vmem %s6, %s772
      $region64: #{tpu_custom_call.1} parent=59 // pred_fallthru
        _
    $region60: #{tpu_custom_call.1} parent=5 // pred_fallthru
      _
  $region6: #{tpu_custom_call.1} parent=0 // loop_footer
    %s16 = sadd.s32 1, %s12
  $region7: #{tpu_custom_call.1} parent=0 // loop_footer_branch
    %11 = sbr.rel target = $region3
  $region8: #{tpu_custom_call.1} parent=0 // loop_exit
    _

</llo_original>
